<compile_context>
chip_gen: v7x
topology: tpu7x:2x2x1
jax: 0.10.0
libtpu: 0.0.40
codegen_flags: <defaults>
</compile_context>

<pallas_src>
import jax
import jax.numpy as jnp
import numpy as np
from jax import lax
from jax.experimental import pallas as pl
from jax.experimental.pallas import tpu as pltpu


_BISECT_ITERS = 30  # bracket width 1 -> ~2^-30 tau accuracy before exact finalize


# ---------------------------------------------------------------------------
# per-generation budgets
# ---------------------------------------------------------------------------
def _hw_config():
    """VMEM budgets / min grid steps per TPU generation.

    v5e / v6e have 128 MiB VMEM per core -> big tiles, few grid steps.
    v7x has 64 MiB per TensorCore and 2 TCs -> tighter limit, >= 4 grid steps
    so each core has >= 2 steps to double-buffer.
    """
    try:
        vmem = int(pltpu.get_tpu_info().vmem_capacity_bytes)
    except Exception:
        vmem = 64 * 1024 * 1024  # conservative (v7x-sized) fallback
    if vmem >= 100 * 1024 * 1024:
        return {"temp": 16 * 1024 * 1024, "limit": 96 * 1024 * 1024, "min_steps": 2}
    return {"temp": 8 * 1024 * 1024, "limit": 48 * 1024 * 1024, "min_steps": 4}


# ---------------------------------------------------------------------------
# kernels
# ---------------------------------------------------------------------------
def _sparsemax_kernel_lanes(x_ref, o_ref):
    """Lane-dense layout: x_ref is (D, C); each of the C lane-columns is an
    independent row of logits (length D along sublanes).

    relu identity:  t_i = sum_j relu(z_j - z_i);  i in support  <=>  t_i < 1.
    t is accumulated one sublane-broadcast row at a time, so no (D, D, C)
    pairwise temp and no per-element cross-sublane reductions are needed
    (~2 VPU ops per pairwise element)."""
    x = x_ref[...].astype(jnp.float32)                         # (D, C)
    x = x - jnp.max(x, axis=0, keepdims=True)                  # shift-invariant; fp safety
    d = x.shape[0]

    t = jnp.maximum(x[0:1, :] - x, 0.0)
    for j in range(1, d):                                      # static, fully unrolled
        t = t + jnp.maximum(x[j:j + 1, :] - x, 0.0)

    support = t < 1.0                                          # (D, C)
    k = jnp.sum(support.astype(jnp.float32), axis=0, keepdims=True)       # (1, C)
    s = jnp.sum(jnp.where(support, x, 0.0), axis=0, keepdims=True)        # (1, C)
    tau = (s - 1.0) / k
    o_ref[...] = jnp.maximum(x - tau, 0.0).astype(o_ref.dtype)


def _sparsemax_kernel_rows(x_ref, o_ref):
    """Row layout: x_ref is (R, D); sparsemax along the last (lane) axis.

    tau* solves sum_j relu(z_j - tau) = 1 with tau* in [max(z)-1, max(z)).
    A fixed-iteration bisection brackets tau*, then one exact pass recovers the
    support, k and the exact tau = (sum_{support} z - 1)/k, keeping exact
    sparsemax semantics (outputs sum to 1).  Work is O(D * iters) instead of
    O(D^2) and no (R, D, chunk) temporaries are materialised."""
    x = x_ref[...].astype(jnp.float32)                         # (R, D)
    z = x - jnp.max(x, axis=-1, keepdims=True)                 # max(z) = 0, tau* in [-1, 0)
    r = z.shape[0]

    lo = jnp.full((r, 1), -1.0, jnp.float32)                   # invariant: f(lo) >= 1
    hi = jnp.zeros((r, 1), jnp.float32)                        # invariant: f(hi) <  1

    def body(_, carry):
        lo, hi = carry
        mid = 0.5 * (lo + hi)
        f = jnp.sum(jnp.maximum(z - mid, 0.0), axis=-1, keepdims=True)
        ge = f >= 1.0
        return jnp.where(ge, mid, lo), jnp.where(ge, hi, mid)

    lo, hi = lax.fori_loop(0, _BISECT_ITERS, body, (lo, hi))

    support = z > lo                                           # f(lo) >= 1  =>  k >= 1
    k = jnp.sum(support.astype(jnp.float32), axis=-1, keepdims=True)
    s = jnp.sum(jnp.where(support, z, 0.0), axis=-1, keepdims=True)
    tau = (s - 1.0) / k
    o_ref[...] = jnp.maximum(z - tau, 0.0).astype(o_ref.dtype)


# ---------------------------------------------------------------------------
# tiling heuristics
# ---------------------------------------------------------------------------
def _cdiv(a, b):
    return -(-a // b)


def _pick_tile(n, unit, max_units, min_steps):
    """Return (tile, padded_n): tile is a multiple of `unit`, tile * steps =
    padded_n >= n, the working set stays within budget (max_units), padding is
    bounded by balancing, and there are >= min_steps grid steps when there is
    enough work (v7x: both TensorCores get work, pipeline stays full)."""
    units = _cdiv(n, unit)
    max_units = max(1, max_units)
    steps = _cdiv(units, max_units)
    if units >= min_steps:
        steps = max(steps, min_steps)
    span = _cdiv(units, steps)
    tile = span * unit
    return tile, steps * tile


# ---------------------------------------------------------------------------
# wrappers
# ---------------------------------------------------------------------------
def _sparsemax_lanes(x2d, cfg):
    """Small-D path (D < 128): independent problems on the 128-wide lane axis
    -> full VPU utilisation and unmasked stores."""
    n, d = x2d.shape
    itemsize = jnp.dtype(x2d.dtype).itemsize
    # Working set per 128 lane-columns: ~5 f32 (D, 128) buffers + double-
    # buffered in/out tiles in the input dtype.
    bytes_per_unit = 128 * d * (5 * 4 + 4 * itemsize)
    c, np_cols = _pick_tile(n, 128, cfg["temp"] // bytes_per_unit, cfg["min_steps"])

    # TODO(synk): the two wrapper transposes are extra HBM passes; an in-kernel
    # transpose of (c, D<128) tiles is not reliably lowered by Mosaic, so the
    # wrapper-side transpose is kept for robustness.
    xt = x2d.T                                                 # (D, N) lane-dense
    if np_cols != n:
        xt = jnp.pad(xt, ((0, 0), (0, np_cols - n)))           # zero cols, sliced off

    out = pl.pallas_call(
        _sparsemax_kernel_lanes,
        out_shape=jax.ShapeDtypeStruct((d, np_cols), x2d.dtype),
        grid_spec=pltpu.PrefetchScalarGridSpec(
            num_scalar_prefetch=0,
            grid=(np_cols // c,),
            in_specs=[pl.BlockSpec((d, c), lambda i: (0, i))],
            out_specs=pl.BlockSpec((d, c), lambda i: (0, i)),
        ),
        compiler_params=pltpu.CompilerParams(
            dimension_semantics=("parallel",),
            vmem_limit_bytes=cfg["limit"]),
    )(xt)
    return out[:, :n].T


def _sparsemax_rows(x2d, cfg):
    """Large-D path (D >= 128): (R, D) row tiles with in-kernel tau bisection."""
    n, d = x2d.shape
    itemsize = jnp.dtype(x2d.dtype).itemsize
    g = max(8, 32 // itemsize)                                 # sublane packing (8/16/32)
    bytes_per_unit = g * d * (5 * 4 + 4 * itemsize)
    r, np_rows = _pick_tile(n, g, cfg["temp"] // bytes_per_unit, cfg["min_steps"])
    if np_rows != n:
        x2d = jnp.pad(x2d, ((0, np_rows - n), (0, 0)))         # zero rows, sliced off

    out = pl.pallas_call(
        _sparsemax_kernel_rows,
        out_shape=jax.ShapeDtypeStruct((np_rows, d), x2d.dtype),
        grid_spec=pltpu.PrefetchScalarGridSpec(
            num_scalar_prefetch=0,
            grid=(np_rows // r,),
            in_specs=[pl.BlockSpec((r, d), lambda i: (i, 0))],
            out_specs=pl.BlockSpec((r, d), lambda i: (i, 0)),
        ),
        compiler_params=pltpu.CompilerParams(
            dimension_semantics=("parallel",),
            vmem_limit_bytes=cfg["limit"]),
    )(x2d)
    return out[:n]


def sparsemax(x, dim=-1):
    """Sparsemax along axis `dim` (default -1), matching the PyTorch module."""
    cfg = _hw_config()
    xm = jnp.moveaxis(x, dim, -1)
    shape = xm.shape
    d = shape[-1]
    x2d = xm.reshape(-1, d)
    if d < 128:
        o2d = _sparsemax_lanes(x2d, cfg)
    else:
        o2d = _sparsemax_rows(x2d, cfg)
    return jnp.moveaxis(o2d.reshape(shape), -1, dim)


# ---------------------------------------------------------------------------
# pure-JAX reference (direct transcription of the torch sort-based code)
# ---------------------------------------------------------------------------
def _sparsemax_ref(x, dim=-1):
    xm = jnp.moveaxis(x, dim, -1).astype(jnp.float32)
    z = xm - jnp.max(xm, axis=-1, keepdims=True)
    zs = jnp.flip(jnp.sort(z, axis=-1), axis=-1)               # descending
    d = z.shape[-1]
    rng = jnp.arange(1, d + 1, dtype=z.dtype)
    bound = 1.0 + rng * zs
    cs = jnp.cumsum(zs, axis=-1)
    is_gt = (bound > cs).astype(z.dtype)
    k = jnp.max(is_gt * rng, axis=-1, keepdims=True)
    taus = (jnp.sum(is_gt * zs, axis=-1, keepdims=True) - 1.0) / k
    out = jnp.maximum(z - taus, 0.0)
    return jnp.moveaxis(out, -1, dim).astype(x.dtype)


if __name__ == "__main__":
    key = jax.random.PRNGKey(0)
    # Sparsemax has no parameters; deterministic example input (lane-dense path).
    x = jax.random.normal(key, (2, 4, 16, 16), dtype=jnp.float32)
    y = jax.block_until_ready(sparsemax(x, dim=-1))
    y_ref = _sparsemax_ref(x, dim=-1)
    np.testing.assert_allclose(np.asarray(y), np.asarray(y_ref),
                               rtol=1e-5, atol=1e-5)
    assert np.all(np.asarray(y) >= 0.0)
    np.testing.assert_allclose(np.asarray(jnp.sum(y, axis=-1)), 1.0, atol=1e-4)

    # Large-D row path (bisection), incl. D not a multiple of 128 and ragged N.
    x2 = jax.random.normal(jax.random.PRNGKey(1), (3, 5, 160), dtype=jnp.float32)
    y2 = jax.block_until_ready(sparsemax(x2, dim=-1))
    y2_ref = _sparsemax_ref(x2, dim=-1)
    np.testing.assert_allclose(np.asarray(y2), np.asarray(y2_ref),
                               rtol=1e-5, atol=1e-5)
    np.testing.assert_allclose(np.asarray(jnp.sum(y2, axis=-1)), 1.0, atol=1e-4)

    print("KERNEL_OK")
</pallas_src>

<mosaic_0001>
module attributes {stable_mosaic.version = 11 : i64} {
  func.func @_sparsemax_kernel_lanes(%arg0: i32, %arg1: memref<16x128xf32, #tpu.memory_space<vmem>>, %arg2: memref<16x128xf32, #tpu.memory_space<vmem>>) attributes {dimension_semantics = [#tpu.dimension_semantics<parallel>], iteration_bounds = array<i64: 1>, scalar_prefetch = 0 : i64, scratch_operands = 0 : i64, tpu.core_type = #tpu.core_type<tc>, window_params = [{transform_indices = @transform_0, window_bounds = array<i64: 16, 128>}, {transform_indices = @transform_1, window_bounds = array<i64: 16, 128>}]} {
    %c0 = arith.constant 0 : index
    %c0_0 = arith.constant 0 : index
    %0 = vector.load %arg1[%c0, %c0_0] : memref<16x128xf32, #tpu.memory_space<vmem>>, vector<16x128xf32>
    %cst = arith.constant dense<0xFF800000> : vector<128xf32>
    %1 = vector.multi_reduction <maximumf>, %0, %cst [0] : vector<16x128xf32> to vector<128xf32>
    %2 = vector.shape_cast %1 : vector<128xf32> to vector<1x128xf32>
    %3 = vector.broadcast %2 : vector<1x128xf32> to vector<16x128xf32>
    %4 = arith.subf %0, %3 : vector<16x128xf32>
    %5 = vector.extract_strided_slice %4 {offsets = [0, 0], sizes = [1, 128], strides = [1, 1]} : vector<16x128xf32> to vector<1x128xf32>
    %6 = vector.broadcast %5 : vector<1x128xf32> to vector<16x128xf32>
    %7 = arith.subf %6, %4 : vector<16x128xf32>
    %cst_1 = arith.constant 0.000000e+00 : f32
    %8 = vector.broadcast %cst_1 : f32 to vector<16x128xf32>
    %9 = arith.maximumf %7, %8 : vector<16x128xf32>
    %10 = vector.extract_strided_slice %4 {offsets = [1, 0], sizes = [1, 128], strides = [1, 1]} : vector<16x128xf32> to vector<1x128xf32>
    %11 = vector.broadcast %10 : vector<1x128xf32> to vector<16x128xf32>
    %12 = arith.subf %11, %4 : vector<16x128xf32>
    %cst_2 = arith.constant 0.000000e+00 : f32
    %13 = vector.broadcast %cst_2 : f32 to vector<16x128xf32>
    %14 = arith.maximumf %12, %13 : vector<16x128xf32>
    %15 = arith.addf %9, %14 : vector<16x128xf32>
    %16 = vector.extract_strided_slice %4 {offsets = [2, 0], sizes = [1, 128], strides = [1, 1]} : vector<16x128xf32> to vector<1x128xf32>
    %17 = vector.broadcast %16 : vector<1x128xf32> to vector<16x128xf32>
    %18 = arith.subf %17, %4 : vector<16x128xf32>
    %cst_3 = arith.constant 0.000000e+00 : f32
    %19 = vector.broadcast %cst_3 : f32 to vector<16x128xf32>
    %20 = arith.maximumf %18, %19 : vector<16x128xf32>
    %21 = arith.addf %15, %20 : vector<16x128xf32>
    %22 = vector.extract_strided_slice %4 {offsets = [3, 0], sizes = [1, 128], strides = [1, 1]} : vector<16x128xf32> to vector<1x128xf32>
    %23 = vector.broadcast %22 : vector<1x128xf32> to vector<16x128xf32>
    %24 = arith.subf %23, %4 : vector<16x128xf32>
    %cst_4 = arith.constant 0.000000e+00 : f32
    %25 = vector.broadcast %cst_4 : f32 to vector<16x128xf32>
    %26 = arith.maximumf %24, %25 : vector<16x128xf32>
    %27 = arith.addf %21, %26 : vector<16x128xf32>
    %28 = vector.extract_strided_slice %4 {offsets = [4, 0], sizes = [1, 128], strides = [1, 1]} : vector<16x128xf32> to vector<1x128xf32>
    %29 = vector.broadcast %28 : vector<1x128xf32> to vector<16x128xf32>
    %30 = arith.subf %29, %4 : vector<16x128xf32>
    %cst_5 = arith.constant 0.000000e+00 : f32
    %31 = vector.broadcast %cst_5 : f32 to vector<16x128xf32>
    %32 = arith.maximumf %30, %31 : vector<16x128xf32>
    %33 = arith.addf %27, %32 : vector<16x128xf32>
    %34 = vector.extract_strided_slice %4 {offsets = [5, 0], sizes = [1, 128], strides = [1, 1]} : vector<16x128xf32> to vector<1x128xf32>
    %35 = vector.broadcast %34 : vector<1x128xf32> to vector<16x128xf32>
    %36 = arith.subf %35, %4 : vector<16x128xf32>
    %cst_6 = arith.constant 0.000000e+00 : f32
    %37 = vector.broadcast %cst_6 : f32 to vector<16x128xf32>
    %38 = arith.maximumf %36, %37 : vector<16x128xf32>
    %39 = arith.addf %33, %38 : vector<16x128xf32>
    %40 = vector.extract_strided_slice %4 {offsets = [6, 0], sizes = [1, 128], strides = [1, 1]} : vector<16x128xf32> to vector<1x128xf32>
    %41 = vector.broadcast %40 : vector<1x128xf32> to vector<16x128xf32>
    %42 = arith.subf %41, %4 : vector<16x128xf32>
    %cst_7 = arith.constant 0.000000e+00 : f32
    %43 = vector.broadcast %cst_7 : f32 to vector<16x128xf32>
    %44 = arith.maximumf %42, %43 : vector<16x128xf32>
    %45 = arith.addf %39, %44 : vector<16x128xf32>
    %46 = vector.extract_strided_slice %4 {offsets = [7, 0], sizes = [1, 128], strides = [1, 1]} : vector<16x128xf32> to vector<1x128xf32>
    %47 = vector.broadcast %46 : vector<1x128xf32> to vector<16x128xf32>
    %48 = arith.subf %47, %4 : vector<16x128xf32>
    %cst_8 = arith.constant 0.000000e+00 : f32
    %49 = vector.broadcast %cst_8 : f32 to vector<16x128xf32>
    %50 = arith.maximumf %48, %49 : vector<16x128xf32>
    %51 = arith.addf %45, %50 : vector<16x128xf32>
    %52 = vector.extract_strided_slice %4 {offsets = [8, 0], sizes = [1, 128], strides = [1, 1]} : vector<16x128xf32> to vector<1x128xf32>
    %53 = vector.broadcast %52 : vector<1x128xf32> to vector<16x128xf32>
    %54 = arith.subf %53, %4 : vector<16x128xf32>
    %cst_9 = arith.constant 0.000000e+00 : f32
    %55 = vector.broadcast %cst_9 : f32 to vector<16x128xf32>
    %56 = arith.maximumf %54, %55 : vector<16x128xf32>
    %57 = arith.addf %51, %56 : vector<16x128xf32>
    %58 = vector.extract_strided_slice %4 {offsets = [9, 0], sizes = [1, 128], strides = [1, 1]} : vector<16x128xf32> to vector<1x128xf32>
    %59 = vector.broadcast %58 : vector<1x128xf32> to vector<16x128xf32>
    %60 = arith.subf %59, %4 : vector<16x128xf32>
    %cst_10 = arith.constant 0.000000e+00 : f32
    %61 = vector.broadcast %cst_10 : f32 to vector<16x128xf32>
    %62 = arith.maximumf %60, %61 : vector<16x128xf32>
    %63 = arith.addf %57, %62 : vector<16x128xf32>
    %64 = vector.extract_strided_slice %4 {offsets = [10, 0], sizes = [1, 128], strides = [1, 1]} : vector<16x128xf32> to vector<1x128xf32>
    %65 = vector.broadcast %64 : vector<1x128xf32> to vector<16x128xf32>
    %66 = arith.subf %65, %4 : vector<16x128xf32>
    %cst_11 = arith.constant 0.000000e+00 : f32
    %67 = vector.broadcast %cst_11 : f32 to vector<16x128xf32>
    %68 = arith.maximumf %66, %67 : vector<16x128xf32>
    %69 = arith.addf %63, %68 : vector<16x128xf32>
    %70 = vector.extract_strided_slice %4 {offsets = [11, 0], sizes = [1, 128], strides = [1, 1]} : vector<16x128xf32> to vector<1x128xf32>
    %71 = vector.broadcast %70 : vector<1x128xf32> to vector<16x128xf32>
    %72 = arith.subf %71, %4 : vector<16x128xf32>
    %cst_12 = arith.constant 0.000000e+00 : f32
    %73 = vector.broadcast %cst_12 : f32 to vector<16x128xf32>
    %74 = arith.maximumf %72, %73 : vector<16x128xf32>
    %75 = arith.addf %69, %74 : vector<16x128xf32>
    %76 = vector.extract_strided_slice %4 {offsets = [12, 0], sizes = [1, 128], strides = [1, 1]} : vector<16x128xf32> to vector<1x128xf32>
    %77 = vector.broadcast %76 : vector<1x128xf32> to vector<16x128xf32>
    %78 = arith.subf %77, %4 : vector<16x128xf32>
    %cst_13 = arith.constant 0.000000e+00 : f32
    %79 = vector.broadcast %cst_13 : f32 to vector<16x128xf32>
    %80 = arith.maximumf %78, %79 : vector<16x128xf32>
    %81 = arith.addf %75, %80 : vector<16x128xf32>
    %82 = vector.extract_strided_slice %4 {offsets = [13, 0], sizes = [1, 128], strides = [1, 1]} : vector<16x128xf32> to vector<1x128xf32>
    %83 = vector.broadcast %82 : vector<1x128xf32> to vector<16x128xf32>
    %84 = arith.subf %83, %4 : vector<16x128xf32>
    %cst_14 = arith.constant 0.000000e+00 : f32
    %85 = vector.broadcast %cst_14 : f32 to vector<16x128xf32>
    %86 = arith.maximumf %84, %85 : vector<16x128xf32>
    %87 = arith.addf %81, %86 : vector<16x128xf32>
    %88 = vector.extract_strided_slice %4 {offsets = [14, 0], sizes = [1, 128], strides = [1, 1]} : vector<16x128xf32> to vector<1x128xf32>
    %89 = vector.broadcast %88 : vector<1x128xf32> to vector<16x128xf32>
    %90 = arith.subf %89, %4 : vector<16x128xf32>
    %cst_15 = arith.constant 0.000000e+00 : f32
    %91 = vector.broadcast %cst_15 : f32 to vector<16x128xf32>
    %92 = arith.maximumf %90, %91 : vector<16x128xf32>
    %93 = arith.addf %87, %92 : vector<16x128xf32>
    %94 = vector.extract_strided_slice %4 {offsets = [15, 0], sizes = [1, 128], strides = [1, 1]} : vector<16x128xf32> to vector<1x128xf32>
    %95 = vector.broadcast %94 : vector<1x128xf32> to vector<16x128xf32>
    %96 = arith.subf %95, %4 : vector<16x128xf32>
    %cst_16 = arith.constant 0.000000e+00 : f32
    %97 = vector.broadcast %cst_16 : f32 to vector<16x128xf32>
    %98 = arith.maximumf %96, %97 : vector<16x128xf32>
    %99 = arith.addf %93, %98 : vector<16x128xf32>
    %cst_17 = arith.constant 1.000000e+00 : f32
    %100 = vector.broadcast %cst_17 : f32 to vector<16x128xf32>
    %101 = arith.cmpf olt, %99, %100 : vector<16x128xf32>
    %102 = arith.extui %101 : vector<16x128xi1> to vector<16x128xi32>
    %103 = arith.sitofp %102 : vector<16x128xi32> to vector<16x128xf32>
    %cst_18 = arith.constant dense<0.000000e+00> : vector<128xf32>
    %104 = vector.multi_reduction <add>, %103, %cst_18 [0] : vector<16x128xf32> to vector<128xf32>
    %105 = vector.shape_cast %104 : vector<128xf32> to vector<1x128xf32>
    %cst_19 = arith.constant 0.000000e+00 : f32
    %106 = vector.broadcast %cst_19 : f32 to vector<16x128xf32>
    %107 = arith.select %101, %4, %106 : vector<16x128xi1>, vector<16x128xf32>
    %cst_20 = arith.constant dense<0.000000e+00> : vector<128xf32>
    %108 = vector.multi_reduction <add>, %107, %cst_20 [0] : vector<16x128xf32> to vector<128xf32>
    %109 = vector.shape_cast %108 : vector<128xf32> to vector<1x128xf32>
    %cst_21 = arith.constant 1.000000e+00 : f32
    %110 = vector.broadcast %cst_21 : f32 to vector<1x128xf32>
    %111 = arith.subf %109, %110 : vector<1x128xf32>
    %112 = arith.divf %111, %105 : vector<1x128xf32>
    %113 = vector.broadcast %112 : vector<1x128xf32> to vector<16x128xf32>
    %114 = arith.subf %4, %113 : vector<16x128xf32>
    %cst_22 = arith.constant 0.000000e+00 : f32
    %115 = vector.broadcast %cst_22 : f32 to vector<16x128xf32>
    %116 = arith.maximumf %114, %115 : vector<16x128xf32>
    %c0_23 = arith.constant 0 : index
    %c0_24 = arith.constant 0 : index
    %117 = vector.load %arg2[%c0_23, %c0_24] : memref<16x128xf32, #tpu.memory_space<vmem>>, vector<16x128xf32>
    tpu.vector_store %arg2[%c0_23, %c0_24], %116 {strides = array<i32>} : memref<16x128xf32, #tpu.memory_space<vmem>>, vector<16x128xf32>,
    return
  }
  func.func @transform_0(%arg0: i32) -> (i32, i32) {
    %c0_i32 = arith.constant 0 : i32
    %c0_i32_0 = arith.constant 0 : i32
    return %c0_i32, %arg0 : i32, i32
  }
  func.func @transform_1(%arg0: i32) -> (i32, i32) {
    %c0_i32 = arith.constant 0 : i32
    %c0_i32_0 = arith.constant 0 : i32
    return %c0_i32, %arg0 : i32, i32
  }
}

</mosaic_0001>

<llo_original>
// kernel: tpu_custom_call.1
$region0: #{tpu_custom_call.1}
  #allocation0 [shape = 'u32[]', space=smem, size = 0x4, offset = 0x4, fixed_abs, tag = 'smem constant byte address 0x4 - core index']
  #allocation1 [shape = 'u32[144,128]{1,0:T(1,128)}', space=vmem, size = 0x12000, scoped, tag = 'internal scratch']
  %s0 = inlined_call_operand.hbm [shape: f32[16,128], index: 0, kind: input, shape index: {}]
  %s1 = inlined_call_operand.hbm [shape: f32[16,128], index: 1, kind: output, shape index: {}]
  %s2 = sld [smem:[#allocation0]]
  $region18: #{tpu_custom_call.1} parent=0
    _
  %s4 = ssub.s32 1, %s2
  %s5 = scalar_select 0, %s4, %s2
  $region1: #{tpu_custom_call.1} parent=0
    #allocation2 [shape = 'u8[8192]{0}', space=vmem, size = 0x2000, scoped, tag = 'input window, operand 0, single buffered']
    #allocation3 [shape = 's32[1]{0}', space=sflag, size = 0x4, scoped, tag = 'scoped memory for tpu_custom_call.1']
    #allocation4 [shape = 's32[1]{0}', space=sflag, size = 0x4, scoped, tag = 'scoped memory for tpu_custom_call.1']
    #allocation5 [shape = 'u8[8192]{0}', space=vmem, size = 0x2000, scoped, tag = 'output window, operand 0, single buffered']
    %6 = vsyncpa [#allocation3], 0
    %7 = vsyncpa [#allocation4], 0
    // Predicated region
    $region2: #{tpu_custom_call.1} parent=1 // pred_check
      _
    $region3: #{tpu_custom_call.1} parent=1 // pred_check_branch
      %9 = sbr.rel (0) target = $region5
    $region4: #{tpu_custom_call.1} parent=1 // pred_region
      %s11 = ssub.s32 256, 256
      %12 = vsyncadd [#allocation3], %s11
      %s13 = sshll.u32 [#allocation2], 4
      %s14 = int_to_ptr.vmem [resolvable:$true] %s13
      %19 = dma.hbm_to_vmem [thread:$0]  %s0, 256, %s14, [#allocation3], 128, 128, 8
    $region5: #{tpu_custom_call.1} parent=1 // pred_fallthru
      _
    // Predicated region
    $region6: #{tpu_custom_call.1} parent=1 // pred_check
      _
    $region7: #{tpu_custom_call.1} parent=1 // pred_check_branch
      %21 = sbr.rel (0) target = $region9
    $region8: #{tpu_custom_call.1} parent=1 // pred_region
      %22 = dma.done [#allocation3], 256
    $region9: #{tpu_custom_call.1} parent=1 // pred_fallthru
      _
    %v23 = vld [vmem:[#allocation2] sm:$0xff]
    %v24 = vld [vmem:[#allocation2 + $0x8] sm:$0xff]
    %v25 = vmax.f32 %v23, %v24
    %v26 = vrot.slane %v25, 4
    %v27 = vmax.f32 %v25, %v26
    %v28 = vrot.slane %v27, 2
    %v29 = vmax.f32 %v27, %v28
    %v30 = vrot.slane %v29, 1
    %v31 = vmax.f32 %v29, %v30
    %v32 = vsub.f32 %v23, %v31
    %v33 = vsub.f32 %v24, %v31
    %v34 = vlaneseq
    %v35 = vshrl.u32 %v34, 7
    %v36 = vsub.s32 0, %v35
    %v37 = vrot.slane %v32, %v36
    %v38 = vsub.f32 %v37, %v32
    %v39 = vsub.f32 %v37, %v33
    %v40 = vmax.f32 %v38, 0.0
    %v41 = vmax.f32 %v39, 0.0
    %v42 = vlaneseq
    %v43 = vshrl.u32 %v42, 7
    %v44 = vsub.s32 1, %v43
    %v45 = vrot.slane %v32, %v44
    %v46 = vsub.f32 %v45, %v32
    %v47 = vsub.f32 %v45, %v33
    %v48 = vmax.f32 %v46, 0.0
    %v49 = vmax.f32 %v47, 0.0
    %v50 = vadd.f32 %v40, %v48
    %v51 = vadd.f32 %v41, %v49
    %v52 = vlaneseq
    %v53 = vshrl.u32 %v52, 7
    %v54 = vsub.s32 2, %v53
    %v55 = vrot.slane %v32, %v54
    %v56 = vsub.f32 %v55, %v32
    %v57 = vsub.f32 %v55, %v33
    %v58 = vmax.f32 %v56, 0.0
    %v59 = vmax.f32 %v57, 0.0
    %v60 = vadd.f32 %v50, %v58
    %v61 = vadd.f32 %v51, %v59
    %v62 = vlaneseq
    %v63 = vshrl.u32 %v62, 7
    %v64 = vsub.s32 3, %v63
    %v65 = vrot.slane %v32, %v64
    %v66 = vsub.f32 %v65, %v32
    %v67 = vsub.f32 %v65, %v33
    %v68 = vmax.f32 %v66, 0.0
    %v69 = vmax.f32 %v67, 0.0
    %v70 = vadd.f32 %v60, %v68
    %v71 = vadd.f32 %v61, %v69
    %v72 = vlaneseq
    %v73 = vshrl.u32 %v72, 7
    %v74 = vsub.s32 4, %v73
    %v75 = vrot.slane %v32, %v74
    %v76 = vsub.f32 %v75, %v32
    %v77 = vsub.f32 %v75, %v33
    %v78 = vmax.f32 %v76, 0.0
    %v79 = vmax.f32 %v77, 0.0
    %v80 = vadd.f32 %v70, %v78
    %v81 = vadd.f32 %v71, %v79
    %v82 = vlaneseq
    %v83 = vshrl.u32 %v82, 7
    %v84 = vsub.s32 5, %v83
    %v85 = vrot.slane %v32, %v84
    %v86 = vsub.f32 %v85, %v32
    %v87 = vsub.f32 %v85, %v33
    %v88 = vmax.f32 %v86, 0.0
    %v89 = vmax.f32 %v87, 0.0
    %v90 = vadd.f32 %v80, %v88
    %v91 = vadd.f32 %v81, %v89
    %v92 = vlaneseq
    %v93 = vshrl.u32 %v92, 7
    %v94 = vsub.s32 6, %v93
    %v95 = vrot.slane %v32, %v94
    %v96 = vsub.f32 %v95, %v32
    %v97 = vsub.f32 %v95, %v33
    %v98 = vmax.f32 %v96, 0.0
    %v99 = vmax.f32 %v97, 0.0
    %v100 = vadd.f32 %v90, %v98
    %v101 = vadd.f32 %v91, %v99
    %v102 = vlaneseq
    %v103 = vshrl.u32 %v102, 7
    %v104 = vsub.s32 7, %v103
    %v105 = vrot.slane %v32, %v104
    %v106 = vsub.f32 %v105, %v32
    %v107 = vsub.f32 %v105, %v33
    %v108 = vmax.f32 %v106, 0.0
    %v109 = vmax.f32 %v107, 0.0
    %v110 = vadd.f32 %v100, %v108
    %v111 = vadd.f32 %v101, %v109
    %v112 = vlaneseq
    %v113 = vshrl.u32 %v112, 7
    %v114 = vsub.s32 0, %v113
    %v115 = vrot.slane %v33, %v114
    %v116 = vsub.f32 %v115, %v32
    %v117 = vsub.f32 %v115, %v33
    %v118 = vmax.f32 %v116, 0.0
    %v119 = vmax.f32 %v117, 0.0
    %v120 = vadd.f32 %v110, %v118
    %v121 = vadd.f32 %v111, %v119
    %v122 = vlaneseq
    %v123 = vshrl.u32 %v122, 7
    %v124 = vsub.s32 1, %v123
    %v125 = vrot.slane %v33, %v124
    %v126 = vsub.f32 %v125, %v32
    %v127 = vsub.f32 %v125, %v33
    %v128 = vmax.f32 %v126, 0.0
    %v129 = vmax.f32 %v127, 0.0
    %v130 = vadd.f32 %v120, %v128
    %v131 = vadd.f32 %v121, %v129
    %v132 = vlaneseq
    %v133 = vshrl.u32 %v132, 7
    %v134 = vsub.s32 2, %v133
    %v135 = vrot.slane %v33, %v134
    %v136 = vsub.f32 %v135, %v32
    %v137 = vsub.f32 %v135, %v33
    %v138 = vmax.f32 %v136, 0.0
    %v139 = vmax.f32 %v137, 0.0
    %v140 = vadd.f32 %v130, %v138
    %v141 = vadd.f32 %v131, %v139
    %v142 = vlaneseq
    %v143 = vshrl.u32 %v142, 7
    %v144 = vsub.s32 3, %v143
    %v145 = vrot.slane %v33, %v144
    %v146 = vsub.f32 %v145, %v32
    %v147 = vsub.f32 %v145, %v33
    %v148 = vmax.f32 %v146, 0.0
    %v149 = vmax.f32 %v147, 0.0
    %v150 = vadd.f32 %v140, %v148
    %v151 = vadd.f32 %v141, %v149
    %v152 = vlaneseq
    %v153 = vshrl.u32 %v152, 7
    %v154 = vsub.s32 4, %v153
    %v155 = vrot.slane %v33, %v154
    %v156 = vsub.f32 %v155, %v32
    %v157 = vsub.f32 %v155, %v33
    %v158 = vmax.f32 %v156, 0.0
    %v159 = vmax.f32 %v157, 0.0
    %v160 = vadd.f32 %v150, %v158
    %v161 = vadd.f32 %v151, %v159
    %v162 = vlaneseq
    %v163 = vshrl.u32 %v162, 7
    %v164 = vsub.s32 5, %v163
    %v165 = vrot.slane %v33, %v164
    %v166 = vsub.f32 %v165, %v32
    %v167 = vsub.f32 %v165, %v33
    %v168 = vmax.f32 %v166, 0.0
    %v169 = vmax.f32 %v167, 0.0
    %v170 = vadd.f32 %v160, %v168
    %v171 = vadd.f32 %v161, %v169
    %v172 = vlaneseq
    %v173 = vshrl.u32 %v172, 7
    %v174 = vsub.s32 6, %v173
    %v175 = vrot.slane %v33, %v174
    %v176 = vsub.f32 %v175, %v32
    %v177 = vsub.f32 %v175, %v33
    %v178 = vmax.f32 %v176, 0.0
    %v179 = vmax.f32 %v177, 0.0
    %v180 = vadd.f32 %v170, %v178
    %v181 = vadd.f32 %v171, %v179
    %v182 = vlaneseq
    %v183 = vshrl.u32 %v182, 7
    %v184 = vsub.s32 7, %v183
    %v185 = vrot.slane %v33, %v184
    %v186 = vsub.f32 %v185, %v32
    %v187 = vsub.f32 %v185, %v33
    %v188 = vmax.f32 %v186, 0.0
    %v189 = vmax.f32 %v187, 0.0
    %v190 = vadd.f32 %v180, %v188
    %v191 = vadd.f32 %v181, %v189
    %vm192 = vcmp.lt.f32.partialorder %v190, 1.0
    %vm193 = vcmp.lt.f32.partialorder %v191, 1.0
    %v194 = vsel %vm192, 1, 0
    %v195 = vsel %vm193, 1, 0
    %v196 = vcvt.s32.f32 %v194
    %v197 = vcvt.s32.f32 %v195
    %v198 = vadd.f32 %v196, %v197
    %v199 = vrot.slane %v198, 4
    %v200 = vadd.f32 %v198, %v199
    %v201 = vrot.slane %v200, 2
    %v202 = vadd.f32 %v200, %v201
    %v203 = vrot.slane %v202, 1
    %v204 = vadd.f32 %v202, %v203
    %v205 = vsel %vm192, %v32, 0.0
    %v206 = vsel %vm193, %v33, 0.0
    %v207 = vadd.f32 %v205, %v206
    %v208 = vrot.slane %v207, 4
    %v209 = vadd.f32 %v207, %v208
    %v210 = vrot.slane %v209, 2
    %v211 = vadd.f32 %v209, %v210
    %v212 = vrot.slane %v211, 1
    %v213 = vadd.f32 %v211, %v212
    %v214 = vsub.f32 %v213, 1.0
    %v215 = vrcp.pop %v204
    %v216 = vmul.f32 %v214, %v215
    %v217 = vsub.f32 %v32, %v216
    %v218 = vsub.f32 %v33, %v216
    %v219 = vmax.f32 %v217, 0.0
    %v220 = vmax.f32 %v218, 0.0
    %221 = vst [vmem:[#allocation5] sm:$0xff] %v219
    %222 = vst [vmem:[#allocation5 + $0x8] sm:$0xff] %v220
    // Predicated region
    $region10: #{tpu_custom_call.1} parent=1 // pred_check
      _
    $region11: #{tpu_custom_call.1} parent=1 // pred_check_branch
      %224 = sbr.rel (0) target = $region13
    $region12: #{tpu_custom_call.1} parent=1 // pred_region
      %s226 = ssub.s32 256, 256
      %227 = vsyncadd [#allocation4], %s226
      %s228 = sshll.u32 [#allocation5], 4
      %s229 = int_to_ptr.vmem [resolvable:$true] %s228
      %234 = dma.vmem_to_hbm [thread:$0]  %s229, 256, %s1, [#allocation4], 128, 128, 8
    $region13: #{tpu_custom_call.1} parent=1 // pred_fallthru
      _
    // Predicated region
    $region14: #{tpu_custom_call.1} parent=1 // pred_check
      _
    $region15: #{tpu_custom_call.1} parent=1 // pred_check_branch
      %236 = sbr.rel (0) target = $region17
    $region16: #{tpu_custom_call.1} parent=1 // pred_region
      %237 = dma.done [#allocation4], 256
    $region17: #{tpu_custom_call.1} parent=1 // pred_fallthru
      _
    %238 = vsyncpa [#allocation3], 1
    %239 = vsyncpa [#allocation4], 1

</llo_original>
